<compile_context>
chip_gen: v5e
topology: v5e:2x2
jax: 0.10.0
libtpu: 0.0.40
codegen_flags: <defaults>
</compile_context>

<pallas_src>
import functools

import jax
import jax.numpy as jnp
from jax import lax
from jax.experimental import pallas as pl
from jax.experimental.pallas import tpu as pltpu


def _flash_mha_kernel(qp_ref, kp_ref, vp_ref, wo_ref, o_ref,
                      m_sc, l_sc, acc_sc, *, num_heads, d_k, d_v):
    """Grid = (B, n_q, n_kv).  One (query tile, KV tile) step, all heads."""
    kv = pl.program_id(2)

    @pl.when(kv == 0)
    def _():
        m_sc[...] = jnp.full(m_sc.shape, -jnp.inf, dtype=m_sc.dtype)
        l_sc[...] = jnp.zeros(l_sc.shape, dtype=l_sc.dtype)
        acc_sc[...] = jnp.zeros(acc_sc.shape, dtype=acc_sc.dtype)

    qp = qp_ref[0]      # (TQ, h*d_k), pre-scaled by 1/temperature on the host
    kp = kp_ref[0]      # (TK, h*d_k)
    vp = vp_ref[0]      # (TK, h*d_v)

    # Per-head online softmax.  The d_k-wide column slices are non-128-lane
    # aligned when d_k < 128 (accepted cost; see module-level TODO).
    for i in range(num_heads):
        qh = qp[:, i * d_k:(i + 1) * d_k]              # (TQ, d_k)
        kh = kp[:, i * d_k:(i + 1) * d_k]              # (TK, d_k)
        vh = vp[:, i * d_v:(i + 1) * d_v]              # (TK, d_v)

        # q @ k.T without materializing a transpose (NT contraction on dim 1).
        s = lax.dot_general(qh, kh, (((1,), (1,)), ((), ())),
                            preferred_element_type=jnp.float32)      # (TQ, TK)

        m_prev = m_sc[i]                               # (TQ, 1)
        m_new = jnp.maximum(m_prev, jnp.max(s, axis=-1, keepdims=True))
        alpha = jnp.exp(m_prev - m_new)                # rescale of old partials
        p = jnp.exp(s - m_new)                         # unnormalized probs, f32

        l_sc[i] = alpha * l_sc[i] + jnp.sum(p, axis=-1, keepdims=True)
        pv = jnp.dot(p.astype(vh.dtype), vh,
                     preferred_element_type=jnp.float32)              # (TQ, d_v)
        c0, c1 = i * d_v, (i + 1) * d_v
        acc_sc[:, c0:c1] = alpha * acc_sc[:, c0:c1] + pv
        m_sc[i] = m_new

    @pl.when(kv == pl.num_programs(2) - 1)
    def _():
        # Deferred softmax normalization: scales (TQ, d_v) per head instead of
        # the (TQ, S) score matrix.  EUP approx reciprocal + 1 Newton step.
        for i in range(num_heads):
            l_i = l_sc[i]
            inv_l = pl.reciprocal(l_i, approx=True)
            inv_l = inv_l * (2.0 - l_i * inv_l)        # restores f32 accuracy
            c0, c1 = i * d_v, (i + 1) * d_v
            acc_sc[:, c0:c1] = acc_sc[:, c0:c1] * inv_l
        # Output projection: one lane-dense (TQ, h*d_v) @ (h*d_v, D) matmul.
        cat = acc_sc[...].astype(wo_ref.dtype)
        o_ref[0] = jnp.dot(cat, wo_ref[...],
                           preferred_element_type=jnp.float32).astype(o_ref.dtype)


def _pick_tile(seq_len, cap, granularity):
    """Largest divisor of seq_len that is a multiple of `granularity`, <= cap."""
    best = None
    for t in range(granularity, min(cap, seq_len) + 1, granularity):
        if seq_len % t == 0:
            best = t
    if best is not None:
        return best
    if granularity != 8:
        return _pick_tile(seq_len, cap, 8)
    return seq_len            # full-extent block is always legal


def _rup(n, m):
    return ((n + m - 1) // m) * m


def _padded_bytes(rows, cols, itemsize):
    """VMEM footprint of a (rows, cols) buffer after (8, 128) tile padding."""
    return _rup(rows, 8) * _rup(cols, 128) * itemsize


def multi_head_attention(Q, K, V, Wq, Wk, Wv, Wo, *, d_k, tq=None, tk=None,
                         use_bf16=False, out_dtype=jnp.float32):
    """Q, K, V: (B, S, D).  Wq/Wk: (h, D, d_k), Wv: (h, D, d_v), Wo: (h, d_v, D)."""
    B, S, D = Q.shape
    h, _, dk = Wq.shape
    dv = Wv.shape[2]
    assert dk == d_k

    compute_dtype = jnp.bfloat16 if use_bf16 else jnp.float32
    cbytes = jnp.dtype(compute_dtype).itemsize
    obytes = jnp.dtype(out_dtype).itemsize

    gran = 16 if use_bf16 else 8
    if tq is None or S % tq != 0 or tq % 8 != 0:
        tq = _pick_tile(S, 256, gran)
    if tk is None or S % tk != 0 or tk % 8 != 0:
        tk = _pick_tile(S, 512, gran)
    n_q, n_kv = S // tq, S // tk

    inv_temperature = 1.0 / (float(d_k) ** 0.5)

    # Flatten per-head weights into lane-dense 2-D operands:
    #   concat_h(x @ Wq[h]) == x @ [Wq[0] | Wq[1] | ...]  -> (D, h*d_k)
    #   concat_h(head_h) @ Wo_flat, Wo_flat = Wo.reshape(h*d_v, D)
    Wq2 = jnp.transpose(Wq, (1, 0, 2)).reshape(D, h * dk)
    Wk2 = jnp.transpose(Wk, (1, 0, 2)).reshape(D, h * dk)
    Wv2 = jnp.transpose(Wv, (1, 0, 2)).reshape(D, h * dv)
    Wo2 = Wo.reshape(h * dv, D).astype(compute_dtype)

    # Hoisted projections: plain XLA matmuls executed once per token instead of
    # once per (query tile x KV tile) grid step.  Projections run in f32; the
    # single bf16 cast (when requested) happens here, not per kernel step.
    qp = (jnp.einsum('bsd,de->bse', Q, Wq2) * inv_temperature).astype(compute_dtype)
    kp = jnp.einsum('bsd,de->bse', K, Wk2).astype(compute_dtype)
    vp = jnp.einsum('bsd,de->bse', V, Wv2).astype(compute_dtype)

    # Explicit scoped-VMEM budget from the actual (tile-padded) buffer sizes.
    est = (2 * _padded_bytes(tq, h * dk, cbytes)        # Q tile (double-buffered)
           + 2 * _padded_bytes(tk, h * dk, cbytes)      # K tile
           + 2 * _padded_bytes(tk, h * dv, cbytes)      # V tile
           + 2 * _padded_bytes(h * dv, D, cbytes)       # W_O (double-buffered)
           + 2 * _padded_bytes(tq, D, obytes)           # output tile
           + 2 * h * _padded_bytes(tq, 1, 4)            # m, l scratch
           + _padded_bytes(tq, h * dv, 4)               # accumulator scratch
           + 4 * _padded_bytes(tq, tk, 4))              # score / exp temporaries
    try:
        phys_vmem = pltpu.get_tpu_info().vmem_capacity_bytes
    except Exception:
        phys_vmem = 128 * 1024 * 1024
    vmem_limit = max(min(int(est * 1.5) + (4 << 20), int(phys_vmem * 0.85)),
                     32 << 20)

    kernel = functools.partial(_flash_mha_kernel, num_heads=h, d_k=dk, d_v=dv)

    return pl.pallas_call(
        kernel,
        out_shape=jax.ShapeDtypeStruct((B, S, D), out_dtype),
        grid_spec=pltpu.PrefetchScalarGridSpec(
            num_scalar_prefetch=0,
            grid=(B, n_q, n_kv),                        # reduction (KV) axis last
            in_specs=[
                pl.BlockSpec((1, tq, h * dk), lambda b, qi, ki: (b, qi, 0)),  # Qp
                pl.BlockSpec((1, tk, h * dk), lambda b, qi, ki: (b, ki, 0)),  # Kp
                pl.BlockSpec((1, tk, h * dv), lambda b, qi, ki: (b, ki, 0)),  # Vp
                pl.BlockSpec((h * dv, D), lambda b, qi, ki: (0, 0)),          # W_O
            ],
            out_specs=pl.BlockSpec((1, tq, D), lambda b, qi, ki: (b, qi, 0)),
            scratch_shapes=[
                pltpu.VMEM((h, tq, 1), jnp.float32),    # running max m (per head)
                pltpu.VMEM((h, tq, 1), jnp.float32),    # running sum l (per head)
                pltpu.VMEM((tq, h * dv), jnp.float32),  # unnormalized head outputs
            ],
        ),
        compiler_params=pltpu.CompilerParams(
            dimension_semantics=("parallel", "parallel", "arbitrary"),
            vmem_limit_bytes=vmem_limit),
    )(qp, kp, vp, Wo2)


def _reference(Q, K, V, Wq, Wk, Wv, Wo, *, d_k):
    """Plain-JAX mirror of the PyTorch forward (eval mode, mask=None)."""
    temperature = float(d_k) ** 0.5
    heads = []
    for i in range(Wq.shape[0]):
        q = Q @ Wq[i]
        k = K @ Wk[i]
        v = V @ Wv[i]
        attn = jax.nn.softmax(jnp.einsum('bsd,btd->bst', q, k) / temperature,
                              axis=-1)
        heads.append(jnp.einsum('bst,btv->bsv', attn, v))
    cat = jnp.concatenate(heads, axis=-1)                     # (B, S, h*d_v)
    wo_flat = Wo.reshape(-1, Wo.shape[-1])                    # (h*d_v, D)
    return cat @ wo_flat


if __name__ == "__main__":
    # Small shapes consistent with the module.
    B, S, d_model = 2, 8, 32
    h, d_k, d_v = 4, 8, 8

    key = jax.random.PRNGKey(0)
    kq, kk, kv, kwq, kwk, kwv, kwo, kq2, kk2, kv2 = jax.random.split(key, 10)

    Q = jax.random.normal(kq, (B, S, d_model), dtype=jnp.float32)
    K = jax.random.normal(kk, (B, S, d_model), dtype=jnp.float32)
    V = jax.random.normal(kv, (B, S, d_model), dtype=jnp.float32)

    # PyTorch nn.Linear(d_model, d_k) stores (d_k, d_model); here we keep the
    # transposed (d_model, d_k) per-head form the kernel consumes directly.
    scale = 0.1
    Wq = scale * jax.random.normal(kwq, (h, d_model, d_k), dtype=jnp.float32)
    Wk = scale * jax.random.normal(kwk, (h, d_model, d_k), dtype=jnp.float32)
    Wv = scale * jax.random.normal(kwv, (h, d_model, d_v), dtype=jnp.float32)
    Wo = scale * jax.random.normal(kwo, (h, d_v, d_model), dtype=jnp.float32)

    # Single-tile path (S small enough that n_q = n_kv = 1).
    ref = _reference(Q, K, V, Wq, Wk, Wv, Wo, d_k=d_k)
    out = jax.block_until_ready(
        multi_head_attention(Q, K, V, Wq, Wk, Wv, Wo, d_k=d_k))
    assert out.shape == (B, S, d_model)
    assert jnp.allclose(out, ref, atol=1e-4, rtol=1e-4), "mismatch vs ref (f32)"

    # Multi-tile path: exercises the online softmax across several KV tiles.
    S2 = 64
    Q2 = jax.random.normal(kq2, (B, S2, d_model), dtype=jnp.float32)
    K2 = jax.random.normal(kk2, (B, S2, d_model), dtype=jnp.float32)
    V2 = jax.random.normal(kv2, (B, S2, d_model), dtype=jnp.float32)
    ref2 = _reference(Q2, K2, V2, Wq, Wk, Wv, Wo, d_k=d_k)
    out2 = jax.block_until_ready(
        multi_head_attention(Q2, K2, V2, Wq, Wk, Wv, Wo, d_k=d_k, tq=16, tk=16))
    assert jnp.allclose(out2, ref2, atol=1e-4, rtol=1e-4), \
        "mismatch vs ref (f32, tiled KV)"

    # bf16 MXU-input path (v6e/v7x throughput mode), f32 accumulation.
    out_bf16 = jax.block_until_ready(
        multi_head_attention(Q2, K2, V2, Wq, Wk, Wv, Wo, d_k=d_k,
                             tq=16, tk=16, use_bf16=True))
    assert jnp.allclose(out_bf16, ref2, atol=5e-2, rtol=5e-2), \
        "mismatch vs ref (bf16)"

    print("KERNEL_OK")
</pallas_src>

<mosaic_0001>
module attributes {stable_mosaic.version = 11 : i64} {
  func.func @_flash_mha_kernel(%arg0: i32, %arg1: i32, %arg2: i32, %arg3: memref<1x8x32xf32, #tpu.memory_space<vmem>>, %arg4: memref<1x8x32xf32, #tpu.memory_space<vmem>>, %arg5: memref<1x8x32xf32, #tpu.memory_space<vmem>>, %arg6: memref<32x32xf32, #tpu.memory_space<vmem>>, %arg7: memref<1x8x32xf32, #tpu.memory_space<vmem>>, %arg8: memref<4x8x1xf32, #tpu.memory_space<vmem>>, %arg9: memref<4x8x1xf32, #tpu.memory_space<vmem>>, %arg10: memref<8x32xf32, #tpu.memory_space<vmem>>) attributes {dimension_semantics = [#tpu.dimension_semantics<parallel>, #tpu.dimension_semantics<parallel>, #tpu.dimension_semantics<arbitrary>], iteration_bounds = array<i64: 2, 1, 1>, scalar_prefetch = 0 : i64, scratch_operands = 3 : i64, tpu.core_type = #tpu.core_type<tc>, window_params = [{transform_indices = @transform_0, window_bounds = array<i64: 1, 8, 32>}, {transform_indices = @transform_1, window_bounds = array<i64: 1, 8, 32>}, {transform_indices = @transform_2, window_bounds = array<i64: 1, 8, 32>}, {pipeline_mode = #tpu.pipeline_mode<synchronous>, transform_indices = @transform_3, window_bounds = array<i64: 32, 32>}, {transform_indices = @transform_4, window_bounds = array<i64: 1, 8, 32>}]} {
    %c0_i32 = arith.constant 0 : i32
    %0 = arith.cmpi eq, %arg2, %c0_i32 : i32
    %1 = arith.extui %0 : i1 to i32
    %c0_i32_0 = arith.constant 0 : i32
    %2 = arith.cmpi ne, %1, %c0_i32_0 : i32
    scf.if %2 {
      %cst_84 = arith.constant 0xFF800000 : f32
      %140 = vector.broadcast %cst_84 : f32 to vector<4x8x1xf32>
      %c0_85 = arith.constant 0 : index
      %c0_86 = arith.constant 0 : index
      %c0_87 = arith.constant 0 : index
      %141 = vector.load %arg8[%c0_85, %c0_86, %c0_87] : memref<4x8x1xf32, #tpu.memory_space<vmem>>, vector<4x8x1xf32>
      tpu.vector_store %arg8[%c0_85, %c0_86, %c0_87], %140 {strides = array<i32>} : memref<4x8x1xf32, #tpu.memory_space<vmem>>, vector<4x8x1xf32>,
      %cst_88 = arith.constant 0.000000e+00 : f32
      %142 = vector.broadcast %cst_88 : f32 to vector<4x8x1xf32>
      %c0_89 = arith.constant 0 : index
      %c0_90 = arith.constant 0 : index
      %c0_91 = arith.constant 0 : index
      %143 = vector.load %arg9[%c0_89, %c0_90, %c0_91] : memref<4x8x1xf32, #tpu.memory_space<vmem>>, vector<4x8x1xf32>
      tpu.vector_store %arg9[%c0_89, %c0_90, %c0_91], %142 {strides = array<i32>} : memref<4x8x1xf32, #tpu.memory_space<vmem>>, vector<4x8x1xf32>,
      %cst_92 = arith.constant 0.000000e+00 : f32
      %144 = vector.broadcast %cst_92 : f32 to vector<8x32xf32>
      %c0_93 = arith.constant 0 : index
      %c0_94 = arith.constant 0 : index
      %145 = vector.load %arg10[%c0_93, %c0_94] : memref<8x32xf32, #tpu.memory_space<vmem>>, vector<8x32xf32>
      tpu.vector_store %arg10[%c0_93, %c0_94], %144 {strides = array<i32>} : memref<8x32xf32, #tpu.memory_space<vmem>>, vector<8x32xf32>,
    } else {
    }
    %c0 = arith.constant 0 : index
    %c0_1 = arith.constant 0 : index
    %c0_2 = arith.constant 0 : index
    %3 = vector.load %arg3[%c0, %c0_1, %c0_2] : memref<1x8x32xf32, #tpu.memory_space<vmem>>, vector<1x8x32xf32>
    %4 = vector.shape_cast %3 : vector<1x8x32xf32> to vector<8x32xf32>
    %c0_3 = arith.constant 0 : index
    %c0_4 = arith.constant 0 : index
    %c0_5 = arith.constant 0 : index
    %5 = vector.load %arg4[%c0_3, %c0_4, %c0_5] : memref<1x8x32xf32, #tpu.memory_space<vmem>>, vector<1x8x32xf32>
    %6 = vector.shape_cast %5 : vector<1x8x32xf32> to vector<8x32xf32>
    %c0_6 = arith.constant 0 : index
    %c0_7 = arith.constant 0 : index
    %c0_8 = arith.constant 0 : index
    %7 = vector.load %arg5[%c0_6, %c0_7, %c0_8] : memref<1x8x32xf32, #tpu.memory_space<vmem>>, vector<1x8x32xf32>
    %8 = vector.shape_cast %7 : vector<1x8x32xf32> to vector<8x32xf32>
    %9 = vector.extract_strided_slice %4 {offsets = [0, 0], sizes = [8, 8], strides = [1, 1]} : vector<8x32xf32> to vector<8x8xf32>
    %10 = vector.extract_strided_slice %6 {offsets = [0, 0], sizes = [8, 8], strides = [1, 1]} : vector<8x32xf32> to vector<8x8xf32>
    %11 = vector.extract_strided_slice %8 {offsets = [0, 0], sizes = [8, 8], strides = [1, 1]} : vector<8x32xf32> to vector<8x8xf32>
    %cst = arith.constant dense<0.000000e+00> : vector<8x8xf32>
    %12 = tpu.matmul %9, %10, %cst {dimension_numbers = #tpu.dot_dimension_numbers<[1], [1], [0], [0], [0, 0, 1, 0], [], []>} : vector<8x8xf32>, vector<8x8xf32>, vector<8x8xf32> -> vector<8x8xf32>
    %c0_9 = arith.constant 0 : index
    %c0_10 = arith.constant 0 : index
    %c0_11 = arith.constant 0 : index
    %13 = vector.load %arg8[%c0_9, %c0_10, %c0_11] : memref<4x8x1xf32, #tpu.memory_space<vmem>>, vector<1x8x1xf32>
    %14 = vector.shape_cast %13 : vector<1x8x1xf32> to vector<8x1xf32>
    %cst_12 = arith.constant dense<0xFF800000> : vector<8xf32>
    %15 = vector.multi_reduction <maximumf>, %12, %cst_12 [1] : vector<8x8xf32> to vector<8xf32>
    %16 = vector.shape_cast %15 : vector<8xf32> to vector<8x1xf32>
    %17 = arith.maximumf %14, %16 : vector<8x1xf32>
    %18 = arith.subf %14, %17 : vector<8x1xf32>
    %19 = math.exp %18 : vector<8x1xf32>
    %20 = vector.broadcast %17 : vector<8x1xf32> to vector<8x8xf32>
    %21 = arith.subf %12, %20 : vector<8x8xf32>
    %22 = math.exp %21 : vector<8x8xf32>
    %c0_13 = arith.constant 0 : index
    %c0_14 = arith.constant 0 : index
    %c0_15 = arith.constant 0 : index
    %23 = vector.load %arg9[%c0_13, %c0_14, %c0_15] : memref<4x8x1xf32, #tpu.memory_space<vmem>>, vector<1x8x1xf32>
    %24 = vector.shape_cast %23 : vector<1x8x1xf32> to vector<8x1xf32>
    %25 = arith.mulf %19, %24 : vector<8x1xf32>
    %cst_16 = arith.constant dense<0.000000e+00> : vector<8xf32>
    %26 = vector.multi_reduction <add>, %22, %cst_16 [1] : vector<8x8xf32> to vector<8xf32>
    %27 = vector.shape_cast %26 : vector<8xf32> to vector<8x1xf32>
    %28 = arith.addf %25, %27 : vector<8x1xf32>
    %c0_17 = arith.constant 0 : index
    %c0_18 = arith.constant 0 : index
    %c0_19 = arith.constant 0 : index
    %29 = vector.load %arg9[%c0_17, %c0_18, %c0_19] : memref<4x8x1xf32, #tpu.memory_space<vmem>>, vector<1x8x1xf32>
    %30 = vector.shape_cast %29 : vector<1x8x1xf32> to vector<8x1xf32>
    %31 = vector.shape_cast %28 : vector<8x1xf32> to vector<1x8x1xf32>
    tpu.vector_store %arg9[%c0_17, %c0_18, %c0_19], %31 {strides = array<i32>} : memref<4x8x1xf32, #tpu.memory_space<vmem>>, vector<1x8x1xf32>,
    %cst_20 = arith.constant dense<0.000000e+00> : vector<8x8xf32>
    %32 = tpu.matmul %22, %11, %cst_20 {dimension_numbers = #tpu.dot_dimension_numbers<[1], [0], [0], [1], [0, 0, 1, 1], [], []>} : vector<8x8xf32>, vector<8x8xf32>, vector<8x8xf32> -> vector<8x8xf32>
    %c0_21 = arith.constant 0 : index
    %c0_22 = arith.constant 0 : index
    %33 = vector.load %arg10[%c0_21, %c0_22] : memref<8x32xf32, #tpu.memory_space<vmem>>, vector<8x8xf32>
    %34 = vector.broadcast %19 : vector<8x1xf32> to vector<8x8xf32>
    %35 = arith.mulf %34, %33 : vector<8x8xf32>
    %36 = arith.addf %35, %32 : vector<8x8xf32>
    %c0_23 = arith.constant 0 : index
    %c0_24 = arith.constant 0 : index
    %37 = vector.load %arg10[%c0_23, %c0_24] : memref<8x32xf32, #tpu.memory_space<vmem>>, vector<8x8xf32>
    tpu.vector_store %arg10[%c0_23, %c0_24], %36 {strides = array<i32>} : memref<8x32xf32, #tpu.memory_space<vmem>>, vector<8x8xf32>,
    %c0_25 = arith.constant 0 : index
    %c0_26 = arith.constant 0 : index
    %c0_27 = arith.constant 0 : index
    %38 = vector.load %arg8[%c0_25, %c0_26, %c0_27] : memref<4x8x1xf32, #tpu.memory_space<vmem>>, vector<1x8x1xf32>
    %39 = vector.shape_cast %38 : vector<1x8x1xf32> to vector<8x1xf32>
    %40 = vector.shape_cast %17 : vector<8x1xf32> to vector<1x8x1xf32>
    tpu.vector_store %arg8[%c0_25, %c0_26, %c0_27], %40 {strides = array<i32>} : memref<4x8x1xf32, #tpu.memory_space<vmem>>, vector<1x8x1xf32>,
    %41 = vector.extract_strided_slice %4 {offsets = [0, 8], sizes = [8, 8], strides = [1, 1]} : vector<8x32xf32> to vector<8x8xf32>
    %42 = vector.extract_strided_slice %6 {offsets = [0, 8], sizes = [8, 8], strides = [1, 1]} : vector<8x32xf32> to vector<8x8xf32>
    %43 = vector.extract_strided_slice %8 {offsets = [0, 8], sizes = [8, 8], strides = [1, 1]} : vector<8x32xf32> to vector<8x8xf32>
    %cst_28 = arith.constant dense<0.000000e+00> : vector<8x8xf32>
    %44 = tpu.matmul %41, %42, %cst_28 {dimension_numbers = #tpu.dot_dimension_numbers<[1], [1], [0], [0], [0, 0, 1, 0], [], []>} : vector<8x8xf32>, vector<8x8xf32>, vector<8x8xf32> -> vector<8x8xf32>
    %c1 = arith.constant 1 : index
    %c0_29 = arith.constant 0 : index
    %c0_30 = arith.constant 0 : index
    %45 = vector.load %arg8[%c1, %c0_29, %c0_30] : memref<4x8x1xf32, #tpu.memory_space<vmem>>, vector<1x8x1xf32>
    %46 = vector.shape_cast %45 : vector<1x8x1xf32> to vector<8x1xf32>
    %cst_31 = arith.constant dense<0xFF800000> : vector<8xf32>
    %47 = vector.multi_reduction <maximumf>, %44, %cst_31 [1] : vector<8x8xf32> to vector<8xf32>
    %48 = vector.shape_cast %47 : vector<8xf32> to vector<8x1xf32>
    %49 = arith.maximumf %46, %48 : vector<8x1xf32>
    %50 = arith.subf %46, %49 : vector<8x1xf32>
    %51 = math.exp %50 : vector<8x1xf32>
    %52 = vector.broadcast %49 : vector<8x1xf32> to vector<8x8xf32>
    %53 = arith.subf %44, %52 : vector<8x8xf32>
    %54 = math.exp %53 : vector<8x8xf32>
    %c1_32 = arith.constant 1 : index
    %c0_33 = arith.constant 0 : index
    %c0_34 = arith.constant 0 : index
    %55 = vector.load %arg9[%c1_32, %c0_33, %c0_34] : memref<4x8x1xf32, #tpu.memory_space<vmem>>, vector<1x8x1xf32>
    %56 = vector.shape_cast %55 : vector<1x8x1xf32> to vector<8x1xf32>
    %57 = arith.mulf %51, %56 : vector<8x1xf32>
    %cst_35 = arith.constant dense<0.000000e+00> : vector<8xf32>
    %58 = vector.multi_reduction <add>, %54, %cst_35 [1] : vector<8x8xf32> to vector<8xf32>
    %59 = vector.shape_cast %58 : vector<8xf32> to vector<8x1xf32>
    %60 = arith.addf %57, %59 : vector<8x1xf32>
    %c1_36 = arith.constant 1 : index
    %c0_37 = arith.constant 0 : index
    %c0_38 = arith.constant 0 : index
    %61 = vector.load %arg9[%c1_36, %c0_37, %c0_38] : memref<4x8x1xf32, #tpu.memory_space<vmem>>, vector<1x8x1xf32>
    %62 = vector.shape_cast %61 : vector<1x8x1xf32> to vector<8x1xf32>
    %63 = vector.shape_cast %60 : vector<8x1xf32> to vector<1x8x1xf32>
    tpu.vector_store %arg9[%c1_36, %c0_37, %c0_38], %63 {strides = array<i32>} : memref<4x8x1xf32, #tpu.memory_space<vmem>>, vector<1x8x1xf32>,
    %cst_39 = arith.constant dense<0.000000e+00> : vector<8x8xf32>
    %64 = tpu.matmul %54, %43, %cst_39 {dimension_numbers = #tpu.dot_dimension_numbers<[1], [0], [0], [1], [0, 0, 1, 1], [], []>} : vector<8x8xf32>, vector<8x8xf32>, vector<8x8xf32> -> vector<8x8xf32>
    %c0_40 = arith.constant 0 : index
    %c8 = arith.constant 8 : index
    %65 = vector.load %arg10[%c0_40, %c8] : memref<8x32xf32, #tpu.memory_space<vmem>>, vector<8x8xf32>
    %66 = vector.broadcast %51 : vector<8x1xf32> to vector<8x8xf32>
    %67 = arith.mulf %66, %65 : vector<8x8xf32>
    %68 = arith.addf %67, %64 : vector<8x8xf32>
    %c0_41 = arith.constant 0 : index
    %c8_42 = arith.constant 8 : index
    %69 = vector.load %arg10[%c0_41, %c8_42] : memref<8x32xf32, #tpu.memory_space<vmem>>, vector<8x8xf32>
    tpu.vector_store %arg10[%c0_41, %c8_42], %68 {strides = array<i32>} : memref<8x32xf32, #tpu.memory_space<vmem>>, vector<8x8xf32>,
    %c1_43 = arith.constant 1 : index
    %c0_44 = arith.constant 0 : index
    %c0_45 = arith.constant 0 : index
    %70 = vector.load %arg8[%c1_43, %c0_44, %c0_45] : memref<4x8x1xf32, #tpu.memory_space<vmem>>, vector<1x8x1xf32>
    %71 = vector.shape_cast %70 : vector<1x8x1xf32> to vector<8x1xf32>
    %72 = vector.shape_cast %49 : vector<8x1xf32> to vector<1x8x1xf32>
    tpu.vector_store %arg8[%c1_43, %c0_44, %c0_45], %72 {strides = array<i32>} : memref<4x8x1xf32, #tpu.memory_space<vmem>>, vector<1x8x1xf32>,
    %73 = vector.extract_strided_slice %4 {offsets = [0, 16], sizes = [8, 8], strides = [1, 1]} : vector<8x32xf32> to vector<8x8xf32>
    %74 = vector.extract_strided_slice %6 {offsets = [0, 16], sizes = [8, 8], strides = [1, 1]} : vector<8x32xf32> to vector<8x8xf32>
    %75 = vector.extract_strided_slice %8 {offsets = [0, 16], sizes = [8, 8], strides = [1, 1]} : vector<8x32xf32> to vector<8x8xf32>
    %cst_46 = arith.constant dense<0.000000e+00> : vector<8x8xf32>
    %76 = tpu.matmul %73, %74, %cst_46 {dimension_numbers = #tpu.dot_dimension_numbers<[1], [1], [0], [0], [0, 0, 1, 0], [], []>} : vector<8x8xf32>, vector<8x8xf32>, vector<8x8xf32> -> vector<8x8xf32>
    %c2 = arith.constant 2 : index
    %c0_47 = arith.constant 0 : index
    %c0_48 = arith.constant 0 : index
    %77 = vector.load %arg8[%c2, %c0_47, %c0_48] : memref<4x8x1xf32, #tpu.memory_space<vmem>>, vector<1x8x1xf32>
    %78 = vector.shape_cast %77 : vector<1x8x1xf32> to vector<8x1xf32>
    %cst_49 = arith.constant dense<0xFF800000> : vector<8xf32>
    %79 = vector.multi_reduction <maximumf>, %76, %cst_49 [1] : vector<8x8xf32> to vector<8xf32>
    %80 = vector.shape_cast %79 : vector<8xf32> to vector<8x1xf32>
    %81 = arith.maximumf %78, %80 : vector<8x1xf32>
    %82 = arith.subf %78, %81 : vector<8x1xf32>
    %83 = math.exp %82 : vector<8x1xf32>
    %84 = vector.broadcast %81 : vector<8x1xf32> to vector<8x8xf32>
    %85 = arith.subf %76, %84 : vector<8x8xf32>
    %86 = math.exp %85 : vector<8x8xf32>
    %c2_50 = arith.constant 2 : index
    %c0_51 = arith.constant 0 : index
    %c0_52 = arith.constant 0 : index
    %87 = vector.load %arg9[%c2_50, %c0_51, %c0_52] : memref<4x8x1xf32, #tpu.memory_space<vmem>>, vector<1x8x1xf32>
    %88 = vector.shape_cast %87 : vector<1x8x1xf32> to vector<8x1xf32>
    %89 = arith.mulf %83, %88 : vector<8x1xf32>
    %cst_53 = arith.constant dense<0.000000e+00> : vector<8xf32>
    %90 = vector.multi_reduction <add>, %86, %cst_53 [1] : vector<8x8xf32> to vector<8xf32>
    %91 = vector.shape_cast %90 : vector<8xf32> to vector<8x1xf32>
    %92 = arith.addf %89, %91 : vector<8x1xf32>
    %c2_54 = arith.constant 2 : index
    %c0_55 = arith.constant 0 : index
    %c0_56 = arith.constant 0 : index
    %93 = vector.load %arg9[%c2_54, %c0_55, %c0_56] : memref<4x8x1xf32, #tpu.memory_space<vmem>>, vector<1x8x1xf32>
    %94 = vector.shape_cast %93 : vector<1x8x1xf32> to vector<8x1xf32>
    %95 = vector.shape_cast %92 : vector<8x1xf32> to vector<1x8x1xf32>
    tpu.vector_store %arg9[%c2_54, %c0_55, %c0_56], %95 {strides = array<i32>} : memref<4x8x1xf32, #tpu.memory_space<vmem>>, vector<1x8x1xf32>,
    %cst_57 = arith.constant dense<0.000000e+00> : vector<8x8xf32>
    %96 = tpu.matmul %86, %75, %cst_57 {dimension_numbers = #tpu.dot_dimension_numbers<[1], [0], [0], [1], [0, 0, 1, 1], [], []>} : vector<8x8xf32>, vector<8x8xf32>, vector<8x8xf32> -> vector<8x8xf32>
    %c0_58 = arith.constant 0 : index
    %c16 = arith.constant 16 : index
    %97 = vector.load %arg10[%c0_58, %c16] : memref<8x32xf32, #tpu.memory_space<vmem>>, vector<8x8xf32>
    %98 = vector.broadcast %83 : vector<8x1xf32> to vector<8x8xf32>
    %99 = arith.mulf %98, %97 : vector<8x8xf32>
    %100 = arith.addf %99, %96 : vector<8x8xf32>
    %c0_59 = arith.constant 0 : index
    %c16_60 = arith.constant 16 : index
    %101 = vector.load %arg10[%c0_59, %c16_60] : memref<8x32xf32, #tpu.memory_space<vmem>>, vector<8x8xf32>
    tpu.vector_store %arg10[%c0_59, %c16_60], %100 {strides = array<i32>} : memref<8x32xf32, #tpu.memory_space<vmem>>, vector<8x8xf32>,
    %c2_61 = arith.constant 2 : index
    %c0_62 = arith.constant 0 : index
    %c0_63 = arith.constant 0 : index
    %102 = vector.load %arg8[%c2_61, %c0_62, %c0_63] : memref<4x8x1xf32, #tpu.memory_space<vmem>>, vector<1x8x1xf32>
    %103 = vector.shape_cast %102 : vector<1x8x1xf32> to vector<8x1xf32>
    %104 = vector.shape_cast %81 : vector<8x1xf32> to vector<1x8x1xf32>
    tpu.vector_store %arg8[%c2_61, %c0_62, %c0_63], %104 {strides = array<i32>} : memref<4x8x1xf32, #tpu.memory_space<vmem>>, vector<1x8x1xf32>,
    %105 = vector.extract_strided_slice %4 {offsets = [0, 24], sizes = [8, 8], strides = [1, 1]} : vector<8x32xf32> to vector<8x8xf32>
    %106 = vector.extract_strided_slice %6 {offsets = [0, 24], sizes = [8, 8], strides = [1, 1]} : vector<8x32xf32> to vector<8x8xf32>
    %107 = vector.extract_strided_slice %8 {offsets = [0, 24], sizes = [8, 8], strides = [1, 1]} : vector<8x32xf32> to vector<8x8xf32>
    %cst_64 = arith.constant dense<0.000000e+00> : vector<8x8xf32>
    %108 = tpu.matmul %105, %106, %cst_64 {dimension_numbers = #tpu.dot_dimension_numbers<[1], [1], [0], [0], [0, 0, 1, 0], [], []>} : vector<8x8xf32>, vector<8x8xf32>, vector<8x8xf32> -> vector<8x8xf32>
    %c3 = arith.constant 3 : index
    %c0_65 = arith.constant 0 : index
    %c0_66 = arith.constant 0 : index
    %109 = vector.load %arg8[%c3, %c0_65, %c0_66] : memref<4x8x1xf32, #tpu.memory_space<vmem>>, vector<1x8x1xf32>
    %110 = vector.shape_cast %109 : vector<1x8x1xf32> to vector<8x1xf32>
    %cst_67 = arith.constant dense<0xFF800000> : vector<8xf32>
    %111 = vector.multi_reduction <maximumf>, %108, %cst_67 [1] : vector<8x8xf32> to vector<8xf32>
    %112 = vector.shape_cast %111 : vector<8xf32> to vector<8x1xf32>
    %113 = arith.maximumf %110, %112 : vector<8x1xf32>
    %114 = arith.subf %110, %113 : vector<8x1xf32>
    %115 = math.exp %114 : vector<8x1xf32>
    %116 = vector.broadcast %113 : vector<8x1xf32> to vector<8x8xf32>
    %117 = arith.subf %108, %116 : vector<8x8xf32>
    %118 = math.exp %117 : vector<8x8xf32>
    %c3_68 = arith.constant 3 : index
    %c0_69 = arith.constant 0 : index
    %c0_70 = arith.constant 0 : index
    %119 = vector.load %arg9[%c3_68, %c0_69, %c0_70] : memref<4x8x1xf32, #tpu.memory_space<vmem>>, vector<1x8x1xf32>
    %120 = vector.shape_cast %119 : vector<1x8x1xf32> to vector<8x1xf32>
    %121 = arith.mulf %115, %120 : vector<8x1xf32>
    %cst_71 = arith.constant dense<0.000000e+00> : vector<8xf32>
    %122 = vector.multi_reduction <add>, %118, %cst_71 [1] : vector<8x8xf32> to vector<8xf32>
    %123 = vector.shape_cast %122 : vector<8xf32> to vector<8x1xf32>
    %124 = arith.addf %121, %123 : vector<8x1xf32>
    %c3_72 = arith.constant 3 : index
    %c0_73 = arith.constant 0 : index
    %c0_74 = arith.constant 0 : index
    %125 = vector.load %arg9[%c3_72, %c0_73, %c0_74] : memref<4x8x1xf32, #tpu.memory_space<vmem>>, vector<1x8x1xf32>
    %126 = vector.shape_cast %125 : vector<1x8x1xf32> to vector<8x1xf32>
    %127 = vector.shape_cast %124 : vector<8x1xf32> to vector<1x8x1xf32>
    tpu.vector_store %arg9[%c3_72, %c0_73, %c0_74], %127 {strides = array<i32>} : memref<4x8x1xf32, #tpu.memory_space<vmem>>, vector<1x8x1xf32>,
    %cst_75 = arith.constant dense<0.000000e+00> : vector<8x8xf32>
    %128 = tpu.matmul %118, %107, %cst_75 {dimension_numbers = #tpu.dot_dimension_numbers<[1], [0], [0], [1], [0, 0, 1, 1], [], []>} : vector<8x8xf32>, vector<8x8xf32>, vector<8x8xf32> -> vector<8x8xf32>
    %c0_76 = arith.constant 0 : index
    %c24 = arith.constant 24 : index
    %129 = vector.load %arg10[%c0_76, %c24] : memref<8x32xf32, #tpu.memory_space<vmem>>, vector<8x8xf32>
    %130 = vector.broadcast %115 : vector<8x1xf32> to vector<8x8xf32>
    %131 = arith.mulf %130, %129 : vector<8x8xf32>
    %132 = arith.addf %131, %128 : vector<8x8xf32>
    %c0_77 = arith.constant 0 : index
    %c24_78 = arith.constant 24 : index
    %133 = vector.load %arg10[%c0_77, %c24_78] : memref<8x32xf32, #tpu.memory_space<vmem>>, vector<8x8xf32>
    tpu.vector_store %arg10[%c0_77, %c24_78], %132 {strides = array<i32>} : memref<8x32xf32, #tpu.memory_space<vmem>>, vector<8x8xf32>,
    %c3_79 = arith.constant 3 : index
    %c0_80 = arith.constant 0 : index
    %c0_81 = arith.constant 0 : index
    %134 = vector.load %arg8[%c3_79, %c0_80, %c0_81] : memref<4x8x1xf32, #tpu.memory_space<vmem>>, vector<1x8x1xf32>
    %135 = vector.shape_cast %134 : vector<1x8x1xf32> to vector<8x1xf32>
    %136 = vector.shape_cast %113 : vector<8x1xf32> to vector<1x8x1xf32>
    tpu.vector_store %arg8[%c3_79, %c0_80, %c0_81], %136 {strides = array<i32>} : memref<4x8x1xf32, #tpu.memory_space<vmem>>, vector<1x8x1xf32>,
    %c0_i32_82 = arith.constant 0 : i32
    %137 = arith.cmpi eq, %arg2, %c0_i32_82 : i32
    %138 = arith.extui %137 : i1 to i32
    %c0_i32_83 = arith.constant 0 : i32
    %139 = arith.cmpi ne, %138, %c0_i32_83 : i32
    scf.if %139 {
      %c0_84 = arith.constant 0 : index
      %c0_85 = arith.constant 0 : index
      %c0_86 = arith.constant 0 : index
      %140 = vector.load %arg9[%c0_84, %c0_85, %c0_86] : memref<4x8x1xf32, #tpu.memory_space<vmem>>, vector<1x8x1xf32>
      %141 = vector.shape_cast %140 : vector<1x8x1xf32> to vector<8x1xf32>
      %142 = tpu.reciprocal %141 {approx = true} : vector<8x1xf32> -> vector<8x1xf32>
      %143 = arith.mulf %141, %142 : vector<8x1xf32>
      %cst_87 = arith.constant 2.000000e+00 : f32
      %144 = vector.broadcast %cst_87 : f32 to vector<8x1xf32>
      %145 = arith.subf %144, %143 : vector<8x1xf32>
      %146 = arith.mulf %142, %145 : vector<8x1xf32>
      %c0_88 = arith.constant 0 : index
      %c0_89 = arith.constant 0 : index
      %147 = vector.load %arg10[%c0_88, %c0_89] : memref<8x32xf32, #tpu.memory_space<vmem>>, vector<8x8xf32>
      %148 = vector.broadcast %146 : vector<8x1xf32> to vector<8x8xf32>
      %149 = arith.mulf %147, %148 : vector<8x8xf32>
      %c0_90 = arith.constant 0 : index
      %c0_91 = arith.constant 0 : index
      %150 = vector.load %arg10[%c0_90, %c0_91] : memref<8x32xf32, #tpu.memory_space<vmem>>, vector<8x8xf32>
      tpu.vector_store %arg10[%c0_90, %c0_91], %149 {strides = array<i32>} : memref<8x32xf32, #tpu.memory_space<vmem>>, vector<8x8xf32>,
      %c1_92 = arith.constant 1 : index
      %c0_93 = arith.constant 0 : index
      %c0_94 = arith.constant 0 : index
      %151 = vector.load %arg9[%c1_92, %c0_93, %c0_94] : memref<4x8x1xf32, #tpu.memory_space<vmem>>, vector<1x8x1xf32>
      %152 = vector.shape_cast %151 : vector<1x8x1xf32> to vector<8x1xf32>
      %153 = tpu.reciprocal %152 {approx = true} : vector<8x1xf32> -> vector<8x1xf32>
      %154 = arith.mulf %152, %153 : vector<8x1xf32>
      %cst_95 = arith.constant 2.000000e+00 : f32
      %155 = vector.broadcast %cst_95 : f32 to vector<8x1xf32>
      %156 = arith.subf %155, %154 : vector<8x1xf32>
      %157 = arith.mulf %153, %156 : vector<8x1xf32>
      %c0_96 = arith.constant 0 : index
      %c8_97 = arith.constant 8 : index
      %158 = vector.load %arg10[%c0_96, %c8_97] : memref<8x32xf32, #tpu.memory_space<vmem>>, vector<8x8xf32>
      %159 = vector.broadcast %157 : vector<8x1xf32> to vector<8x8xf32>
      %160 = arith.mulf %158, %159 : vector<8x8xf32>
      %c0_98 = arith.constant 0 : index
      %c8_99 = arith.constant 8 : index
      %161 = vector.load %arg10[%c0_98, %c8_99] : memref<8x32xf32, #tpu.memory_space<vmem>>, vector<8x8xf32>
      tpu.vector_store %arg10[%c0_98, %c8_99], %160 {strides = array<i32>} : memref<8x32xf32, #tpu.memory_space<vmem>>, vector<8x8xf32>,
      %c2_100 = arith.constant 2 : index
      %c0_101 = arith.constant 0 : index
      %c0_102 = arith.constant 0 : index
      %162 = vector.load %arg9[%c2_100, %c0_101, %c0_102] : memref<4x8x1xf32, #tpu.memory_space<vmem>>, vector<1x8x1xf32>
      %163 = vector.shape_cast %162 : vector<1x8x1xf32> to vector<8x1xf32>
      %164 = tpu.reciprocal %163 {approx = true} : vector<8x1xf32> -> vector<8x1xf32>
      %165 = arith.mulf %163, %164 : vector<8x1xf32>
      %cst_103 = arith.constant 2.000000e+00 : f32
      %166 = vector.broadcast %cst_103 : f32 to vector<8x1xf32>
      %167 = arith.subf %166, %165 : vector<8x1xf32>
      %168 = arith.mulf %164, %167 : vector<8x1xf32>
      %c0_104 = arith.constant 0 : index
      %c16_105 = arith.constant 16 : index
      %169 = vector.load %arg10[%c0_104, %c16_105] : memref<8x32xf32, #tpu.memory_space<vmem>>, vector<8x8xf32>
      %170 = vector.broadcast %168 : vector<8x1xf32> to vector<8x8xf32>
      %171 = arith.mulf %169, %170 : vector<8x8xf32>
      %c0_106 = arith.constant 0 : index
      %c16_107 = arith.constant 16 : index
      %172 = vector.load %arg10[%c0_106, %c16_107] : memref<8x32xf32, #tpu.memory_space<vmem>>, vector<8x8xf32>
      tpu.vector_store %arg10[%c0_106, %c16_107], %171 {strides = array<i32>} : memref<8x32xf32, #tpu.memory_space<vmem>>, vector<8x8xf32>,
      %c3_108 = arith.constant 3 : index
      %c0_109 = arith.constant 0 : index
      %c0_110 = arith.constant 0 : index
      %173 = vector.load %arg9[%c3_108, %c0_109, %c0_110] : memref<4x8x1xf32, #tpu.memory_space<vmem>>, vector<1x8x1xf32>
      %174 = vector.shape_cast %173 : vector<1x8x1xf32> to vector<8x1xf32>
      %175 = tpu.reciprocal %174 {approx = true} : vector<8x1xf32> -> vector<8x1xf32>
      %176 = arith.mulf %174, %175 : vector<8x1xf32>
      %cst_111 = arith.constant 2.000000e+00 : f32
      %177 = vector.broadcast %cst_111 : f32 to vector<8x1xf32>
      %178 = arith.subf %177, %176 : vector<8x1xf32>
      %179 = arith.mulf %175, %178 : vector<8x1xf32>
      %c0_112 = arith.constant 0 : index
      %c24_113 = arith.constant 24 : index
      %180 = vector.load %arg10[%c0_112, %c24_113] : memref<8x32xf32, #tpu.memory_space<vmem>>, vector<8x8xf32>
      %181 = vector.broadcast %179 : vector<8x1xf32> to vector<8x8xf32>
      %182 = arith.mulf %180, %181 : vector<8x8xf32>
      %c0_114 = arith.constant 0 : index
      %c24_115 = arith.constant 24 : index
      %183 = vector.load %arg10[%c0_114, %c24_115] : memref<8x32xf32, #tpu.memory_space<vmem>>, vector<8x8xf32>
      tpu.vector_store %arg10[%c0_114, %c24_115], %182 {strides = array<i32>} : memref<8x32xf32, #tpu.memory_space<vmem>>, vector<8x8xf32>,
      %c0_116 = arith.constant 0 : index
      %c0_117 = arith.constant 0 : index
      %184 = vector.load %arg10[%c0_116, %c0_117] : memref<8x32xf32, #tpu.memory_space<vmem>>, vector<8x32xf32>
      %c0_118 = arith.constant 0 : index
      %c0_119 = arith.constant 0 : index
      %185 = vector.load %arg6[%c0_118, %c0_119] : memref<32x32xf32, #tpu.memory_space<vmem>>, vector<32x32xf32>
      %cst_120 = arith.constant dense<0.000000e+00> : vector<8x32xf32>
      %186 = tpu.matmul %184, %185, %cst_120 {dimension_numbers = #tpu.dot_dimension_numbers<[1], [0], [0], [1], [0, 0, 1, 1], [], []>} : vector<8x32xf32>, vector<32x32xf32>, vector<8x32xf32> -> vector<8x32xf32>
      %c0_121 = arith.constant 0 : index
      %c0_122 = arith.constant 0 : index
      %c0_123 = arith.constant 0 : index
      %187 = vector.load %arg7[%c0_121, %c0_122, %c0_123] : memref<1x8x32xf32, #tpu.memory_space<vmem>>, vector<1x8x32xf32>
      %188 = vector.shape_cast %187 : vector<1x8x32xf32> to vector<8x32xf32>
      %189 = vector.shape_cast %186 : vector<8x32xf32> to vector<1x8x32xf32>
      tpu.vector_store %arg7[%c0_121, %c0_122, %c0_123], %189 {strides = array<i32>} : memref<1x8x32xf32, #tpu.memory_space<vmem>>, vector<1x8x32xf32>,
    } else {
    }
    return
  }
  func.func @transform_0(%arg0: i32, %arg1: i32, %arg2: i32) -> (i32, i32, i32) {
    %c0_i32 = arith.constant 0 : i32
    %c0_i32_0 = arith.constant 0 : i32
    return %arg0, %arg1, %c0_i32 : i32, i32, i32
  }
  func.func @transform_1(%arg0: i32, %arg1: i32, %arg2: i32) -> (i32, i32, i32) {
    %c0_i32 = arith.constant 0 : i32
    %c0_i32_0 = arith.constant 0 : i32
    return %arg0, %arg2, %c0_i32 : i32, i32, i32
  }
  func.func @transform_2(%arg0: i32, %arg1: i32, %arg2: i32) -> (i32, i32, i32) {
    %c0_i32 = arith.constant 0 : i32
    %c0_i32_0 = arith.constant 0 : i32
    return %arg0, %arg2, %c0_i32 : i32, i32, i32
  }
  func.func @transform_3(%arg0: i32, %arg1: i32, %arg2: i32) -> (i32, i32) {
    %c0_i32 = arith.constant 0 : i32
    %c0_i32_0 = arith.constant 0 : i32
    %c0_i32_1 = arith.constant 0 : i32
    return %c0_i32, %c0_i32_0 : i32, i32
  }
  func.func @transform_4(%arg0: i32, %arg1: i32, %arg2: i32) -> (i32, i32, i32) {
    %c0_i32 = arith.constant 0 : i32
    %c0_i32_0 = arith.constant 0 : i32
    return %arg0, %arg1, %c0_i32 : i32, i32, i32
  }
}

</mosaic_0001>

<llo_original>
// kernel: tpu_custom_call.1
$region0: #{tpu_custom_call.1}
  #allocation0 [shape = 'u32[]', space=smem, size = 0x4, offset = 0x4, fixed_abs, tag = 'smem constant byte address 0x4 - core index']
  #allocation1 [shape = 'u32[72,128]{1,0:T(1,128)}', space=vmem, size = 0x9000, scoped, tag = 'internal scratch']
  #allocation2 [shape = 'f32[4,8,1]{2,1,0:T(8,128)}', space=vmem, size = 0x4000, scoped, tag = 'scratch operand']
  #allocation3 [shape = 'f32[4,8,1]{2,1,0:T(8,128)}', space=vmem, size = 0x4000, scoped, tag = 'scratch operand']
  #allocation4 [shape = 'f32[8,32]{1,0:T(8,128)}', space=vmem, size = 0x1000, scoped, tag = 'scratch operand']
  %s0 = inlined_call_operand.hbm [shape: f32[2,8,32], index: 0, kind: input, shape index: {}]
  %s1 = inlined_call_operand.hbm [shape: f32[2,8,32], index: 1, kind: input, shape index: {}]
  %s2 = inlined_call_operand.hbm [shape: f32[2,8,32], index: 2, kind: input, shape index: {}]
  %s3 = inlined_call_operand.hbm [shape: f32[32,32], index: 3, kind: input, shape index: {}]
  %s4 = inlined_call_operand.hbm [shape: f32[2,8,32], index: 4, kind: output, shape index: {}]
  %s5 = sld [smem:[#allocation0]]
  $region73: #{tpu_custom_call.1} parent=0
    _
  %s7 = ssub.s32 1, %s5
  %s8 = scalar_select 0, %s7, %s5
  $region1: #{tpu_custom_call.1} parent=0
    #allocation5 [shape = 'u8[8192]{0}', space=vmem, size = 0x2000, scoped, tag = 'input window, operand 0']
    #allocation6 [shape = 's32[2]{0}', space=sflag, size = 0x8, scoped, tag = 'scoped memory for tpu_custom_call.1']
    #allocation7 [shape = 's32[2]{0}', space=sflag, size = 0x8, scoped, tag = 'scoped memory for tpu_custom_call.1']
    #allocation8 [shape = 'u8[8192]{0}', space=vmem, size = 0x2000, scoped, tag = 'input window, operand 1']
    #allocation9 [shape = 's32[2]{0}', space=sflag, size = 0x8, scoped, tag = 'scoped memory for tpu_custom_call.1']
    #allocation10 [shape = 'u8[8192]{0}', space=vmem, size = 0x2000, scoped, tag = 'input window, operand 2']
    #allocation11 [shape = 'u8[16384]{0}', space=vmem, size = 0x4000, scoped, tag = 'input window, operand 3, single buffered']
    #allocation12 [shape = 's32[1]{0}', space=sflag, size = 0x4, scoped, tag = 'scoped memory for tpu_custom_call.1']
    #allocation13 [shape = 'u8[8192]{0}', space=vmem, size = 0x2000, scoped, tag = 'output window, operand 0']
    %9 = vsyncpa [#allocation6], 0
    %s10 = scalar_lea.sflag [#allocation6], 1
    %11 = vsyncpa %s10, 0
    %12 = vsyncpa [#allocation9], 0
    %s13 = scalar_lea.sflag [#allocation9], 1
    %14 = vsyncpa %s13, 0
    %15 = vsyncpa [#allocation12], 0
    %16 = vsyncpa [#allocation7], 0
    %s17 = scalar_lea.sflag [#allocation7], 1
    %18 = vsyncpa %s17, 0
    loop: start=0, step=1, limit=4
    $region2: #{tpu_custom_call.1} parent=1 // loop_pre_header
      _
    $region3: #{tpu_custom_call.1} parent=1 // loop_header
      %s20 = sphi 0, %s24
      %p21 = scmp.ge.s32.totalorder %s20, 4
      %s27 = sphi 0, %s46
      %s28 = sphi 0, %s42
      %s29 = sphi 0, %s38
      %s30 = sphi 0, %s27
      %s31 = sphi 0, %s28
      %s32 = sphi 0, %s29
      %s33 = sphi 0, %s30
      %s34 = sphi 0, %s31
      %s35 = sphi 0, %s32
      %s51 = sphi 0, %s53
      %s54 = sphi 0, %s51
      %s55 = sphi 0, %s54
      %s71 = sphi 0, %s55
      %s79 = sphi 0, %s81
      %s82 = sphi 0, %s79
      %s83 = sphi 0, %s82
      %s99 = sphi 0, %s83
      %s107 = sphi 0, %s109
      %s110 = sphi 0, %s107
      %s111 = sphi 0, %s110
      %s127 = sphi 0, %s111
      %s131 = sphi 0, %s131
      %s133 = sphi 0, %s131
      %s134 = sphi 0, %s133
      %s148 = sphi 0, %s134
      %s156 = sphi 0, %s158
      %s159 = sphi 0, %s156
      %s160 = sphi 0, %s159
      %s176 = sphi 0, %s160
    $region4: #{tpu_custom_call.1} parent=1 // loop_header_branch
      %23 = sbr.rel (%p21) target = $region8
    $region5: #{tpu_custom_call.1} parent=1 // loop_body
      %s25 = ssub.s32 %s20, 1
      %s26 = ssub.s32 %s20, 2
      %s36 = sadd.s32 1, %s29
      %p37 = scmp.ge.s32.totalorder %s36, 1
      %s38 = scalar_select %p37, 0, %s36
      %s39 = sadd.s32 1, %s28
      %s40 = scalar_select %p37, %s39, %s28
      %p41 = scmp.ge.s32.totalorder %s40, 1
      %s42 = scalar_select %p41, 0, %s40
      %s43 = sadd.s32 1, %s27
      %s44 = scalar_select %p41, %s43, %s27
      %p45 = scmp.ge.s32.totalorder %s44, 2
      %s46 = scalar_select %p45, 0, %s44
      %s47 = ssub.s32 %s27, %s46
      %s48 = ssub.s32 %s28, %s42
      %s49 = sor.u32 %s47, %s48
      %p50 = scmp.eq.s32.totalorder %s49, 0
      %s52 = sadd.s32 %s51, 1
      %s53 = scalar_select %p50, %s51, %s52
      %p56 = pneg %p50
      %p57 = scmp.eq.s32.totalorder %s20, 1
      %p58 = por %p56, %p57
      %p59 = scmp.ne.s32.totalorder %s51, %s54
      %p60 = scmp.eq.s32.totalorder %s20, 0
      %p61 = por %p59, %p60
      %p62 = scmp.ne.s32.totalorder %s51, %s54
      %p63 = scmp.eq.s32.totalorder %s25, 1
      %p64 = por %p62, %p63
      %p65 = scmp.ne.s32.totalorder %s54, %s55
      %p66 = scmp.eq.s32.totalorder %s25, 0
      %p67 = por %p65, %p66
      %p68 = scmp.ne.s32.totalorder %s54, %s55
      %p69 = scmp.eq.s32.totalorder %s26, 1
      %p70 = por %p68, %p69
      %p72 = scmp.ne.s32.totalorder %s55, %s71
      %p73 = scmp.eq.s32.totalorder %s26, 0
      %p74 = por %p72, %p73
      %s75 = ssub.s32 %s27, %s46
      %s76 = ssub.s32 %s29, %s38
      %s77 = sor.u32 %s75, %s76
      %p78 = scmp.eq.s32.totalorder %s77, 0
      %s80 = sadd.s32 %s79, 1
      %s81 = scalar_select %p78, %s79, %s80
      %p84 = pneg %p78
      %p85 = scmp.eq.s32.totalorder %s20, 1
      %p86 = por %p84, %p85
      %p87 = scmp.ne.s32.totalorder %s79, %s82
      %p88 = scmp.eq.s32.totalorder %s20, 0
      %p89 = por %p87, %p88
      %p90 = scmp.ne.s32.totalorder %s79, %s82
      %p91 = scmp.eq.s32.totalorder %s25, 1
      %p92 = por %p90, %p91
      %p93 = scmp.ne.s32.totalorder %s82, %s83
      %p94 = scmp.eq.s32.totalorder %s25, 0
      %p95 = por %p93, %p94
      %p96 = scmp.ne.s32.totalorder %s82, %s83
      %p97 = scmp.eq.s32.totalorder %s26, 1
      %p98 = por %p96, %p97
      %p100 = scmp.ne.s32.totalorder %s83, %s99
      %p101 = scmp.eq.s32.totalorder %s26, 0
      %p102 = por %p100, %p101
      %s103 = ssub.s32 %s27, %s46
      %s104 = ssub.s32 %s29, %s38
      %s105 = sor.u32 %s103, %s104
      %p106 = scmp.eq.s32.totalorder %s105, 0
      %s108 = sadd.s32 %s107, 1
      %s109 = scalar_select %p106, %s107, %s108
      %p112 = pneg %p106
      %p113 = scmp.eq.s32.totalorder %s20, 1
      %p114 = por %p112, %p113
      %p115 = scmp.ne.s32.totalorder %s107, %s110
      %p116 = scmp.eq.s32.totalorder %s20, 0
      %p117 = por %p115, %p116
      %p118 = scmp.ne.s32.totalorder %s107, %s110
      %p119 = scmp.eq.s32.totalorder %s25, 1
      %p120 = por %p118, %p119
      %p121 = scmp.ne.s32.totalorder %s110, %s111
      %p122 = scmp.eq.s32.totalorder %s25, 0
      %p123 = por %p121, %p122
      %p124 = scmp.ne.s32.totalorder %s110, %s111
      %p125 = scmp.eq.s32.totalorder %s26, 1
      %p126 = por %p124, %p125
      %p128 = scmp.ne.s32.totalorder %s111, %s127
      %p129 = scmp.eq.s32.totalorder %s26, 0
      %p130 = por %p128, %p129
      %s132 = sadd.s32 %s131, 1
      %p135 = scmp.eq.s32.totalorder %s20, 1
      %p136 = scmp.ne.s32.totalorder %s131, %s133
      %p137 = scmp.eq.s32.totalorder %s20, 0
      %p138 = por %p136, %p137
      %p139 = scmp.ne.s32.totalorder %s131, %s133
      %p140 = scmp.eq.s32.totalorder %s25, 1
      %p141 = por %p139, %p140
      %p142 = scmp.ne.s32.totalorder %s133, %s134
      %p143 = scmp.eq.s32.totalorder %s25, 0
      %p144 = por %p142, %p143
      %p145 = scmp.ne.s32.totalorder %s133, %s134
      %p146 = scmp.eq.s32.totalorder %s26, 1
      %p147 = por %p145, %p146
      %p149 = scmp.ne.s32.totalorder %s134, %s148
      %p150 = scmp.eq.s32.totalorder %s26, 0
      %p151 = por %p149, %p150
      %s152 = ssub.s32 %s27, %s46
      %s153 = ssub.s32 %s28, %s42
      %s154 = sor.u32 %s152, %s153
      %p155 = scmp.eq.s32.totalorder %s154, 0
      %s157 = sadd.s32 %s156, 1
      %s158 = scalar_select %p155, %s156, %s157
      %p161 = pneg %p155
      %p162 = scmp.eq.s32.totalorder %s20, 1
      %p163 = por %p161, %p162
      %p164 = scmp.ne.s32.totalorder %s156, %s159
      %p165 = scmp.eq.s32.totalorder %s20, 0
      %p166 = por %p164, %p165
      %p167 = scmp.ne.s32.totalorder %s156, %s159
      %p168 = scmp.eq.s32.totalorder %s25, 1
      %p169 = por %p167, %p168
      %p170 = scmp.ne.s32.totalorder %s159, %s160
      %p171 = scmp.eq.s32.totalorder %s25, 0
      %p172 = por %p170, %p171
      %p173 = scmp.ne.s32.totalorder %s159, %s160
      %p174 = scmp.eq.s32.totalorder %s26, 1
      %p175 = por %p173, %p174
      %p177 = scmp.ne.s32.totalorder %s160, %s176
      %p178 = scmp.eq.s32.totalorder %s26, 0
      %p179 = por %p177, %p178
      %p180 = scmp.le.s32.totalorder 1, %s20
      %p181 = scmp.lt.s32.totalorder %s20, 3
      %p182 = pnand %p180, %p181
      %p183 = pneg %p182
      // Predicated region
      $region9: #{tpu_custom_call.1} parent=5 // pred_check
        _
      $region10: #{tpu_custom_call.1} parent=5 // pred_check_branch
        %185 = sbr.rel (%p182) target = $region12
      $region11: #{tpu_custom_call.1} parent=5 // pred_region
        %s186 = ssub.s32 %s20, 1
        // Predicated region
        $region13: #{tpu_custom_call.1} parent=11 // pred_check
          %p187 = pneg %p144
        $region14: #{tpu_custom_call.1} parent=11 // pred_check_branch
          %189 = sbr.rel (%p187) target = $region16
        $region15: #{tpu_custom_call.1} parent=11 // pred_region
          %191 = vsyncadd [#allocation12], 0
          %s192 = sshll.u32 %s3, 4
          %s193 = int_to_ptr.hbm [resolvable:$true] %s192
          %s194 = sshll.u32 [#allocation11], 4
          %s195 = int_to_ptr.vmem [resolvable:$true] %s194
          %200 = dma.hbm_to_vmem [thread:$0]  %s193, 512, %s195, [#allocation12], 128, 128, 8
        $region16: #{tpu_custom_call.1} parent=11 // pred_fallthru
          _
      $region12: #{tpu_custom_call.1} parent=5 // pred_fallthru
        _
      %p201 = scmp.lt.s32.totalorder %s20, 2
      // Predicated region
      $region17: #{tpu_custom_call.1} parent=5 // pred_check
        %p202 = pneg %p201
      $region18: #{tpu_custom_call.1} parent=5 // pred_check_branch
        %204 = sbr.rel (%p202) target = $region20
      $region19: #{tpu_custom_call.1} parent=5 // pred_region
        // Predicated region
        $region21: #{tpu_custom_call.1} parent=19 // pred_check
          %p205 = pneg %p61
        $region22: #{tpu_custom_call.1} parent=19 // pred_check_branch
          %207 = sbr.rel (%p205) target = $region24
        $region23: #{tpu_custom_call.1} parent=19 // pred_region
          %s208 = sand.u32 %s51, 1
          %s209 = scalar_lea.sflag [#allocation6], %s208
          %s210 = sand.u32 %s51, 1
          %s211 = smul.addr %s210, 8
          %s212 = scalar_lea.vmem [#allocation5], %s211
          %214 = vsyncadd %s209, 0
          %s215 = sadd.s32 %s28, %s27
          %s216 = smul.addr %s215, 8
          %s217 = scalar_lea.hbm %s0, %s216
          %s219 = sshll.u32 %s217, 4
          %s220 = int_to_ptr.hbm [resolvable:$true] %s219
          %s221 = sshll.u32 %s212, 4
          %s222 = int_to_ptr.vmem [resolvable:$true] %s221
          %224 = dma.hbm_to_vmem [thread:$0]  %s220, 128, %s222, %s209
        $region24: #{tpu_custom_call.1} parent=19 // pred_fallthru
          _
        // Predicated region
        $region25: #{tpu_custom_call.1} parent=19 // pred_check
          %p225 = pneg %p89
        $region26: #{tpu_custom_call.1} parent=19 // pred_check_branch
          %227 = sbr.rel (%p225) target = $region28
        $region27: #{tpu_custom_call.1} parent=19 // pred_region
          %s228 = sand.u32 %s20, 1
          %s229 = scalar_lea.sflag [#allocation9], %s228
          %s230 = sand.u32 %s79, 1
          %s231 = smul.addr %s230, 8
          %s232 = scalar_lea.vmem [#allocation8], %s231
          %234 = vsyncadd %s229, 0
          %s235 = sadd.s32 %s29, %s27
          %s236 = smul.addr %s235, 8
          %s237 = scalar_lea.hbm %s1, %s236
          %s239 = sshll.u32 %s237, 4
          %s240 = int_to_ptr.hbm [resolvable:$true] %s239
          %s241 = sshll.u32 %s232, 4
          %s242 = int_to_ptr.vmem [resolvable:$true] %s241
          %244 = dma.hbm_to_vmem [thread:$0]  %s240, 128, %s242, %s229
        $region28: #{tpu_custom_call.1} parent=19 // pred_fallthru
          _
        // Predicated region
        $region29: #{tpu_custom_call.1} parent=19 // pred_check
          %p245 = pneg %p117
        $region30: #{tpu_custom_call.1} parent=19 // pred_check_branch
          %247 = sbr.rel (%p245) target = $region32
        $region31: #{tpu_custom_call.1} parent=19 // pred_region
          %s248 = sand.u32 %s20, 1
          %s249 = scalar_lea.sflag [#allocation9], %s248
          %s250 = sand.u32 %s107, 1
          %s251 = smul.addr %s250, 8
          %s252 = scalar_lea.vmem [#allocation10], %s251
          %254 = vsyncadd %s249, 0
          %s255 = sadd.s32 %s29, %s27
          %s256 = smul.addr %s255, 8
          %s257 = scalar_lea.hbm %s2, %s256
          %s259 = sshll.u32 %s257, 4
          %s260 = int_to_ptr.hbm [resolvable:$true] %s259
          %s261 = sshll.u32 %s252, 4
          %s262 = int_to_ptr.vmem [resolvable:$true] %s261
          %264 = dma.hbm_to_vmem [thread:$0]  %s260, 128, %s262, %s249
        $region32: #{tpu_custom_call.1} parent=19 // pred_fallthru
          _
      $region20: #{tpu_custom_call.1} parent=5 // pred_fallthru
        _
      %p265 = scmp.le.s32.totalorder 1, %s20
      %p266 = scmp.lt.s32.totalorder %s20, 3
      %p267 = pnand %p265, %p266
      %p268 = pneg %p267
      // Predicated region
      $region33: #{tpu_custom_call.1} parent=5 // pred_check
        _
      $region34: #{tpu_custom_call.1} parent=5 // pred_check_branch
        %270 = sbr.rel (%p267) target = $region36
      $region35: #{tpu_custom_call.1} parent=5 // pred_region
        %s271 = ssub.s32 %s20, 1
        %s272 = sand.u32 %s54, 1
        %s273 = scalar_lea.sflag [#allocation6], %s272
        %s274 = sand.u32 %s54, 1
        %s275 = smul.addr %s274, 8
        %s276 = scalar_lea.vmem [#allocation5], %s275
        // Predicated region
        $region37: #{tpu_custom_call.1} parent=35 // pred_check
          %p277 = pneg %p67
        $region38: #{tpu_custom_call.1} parent=35 // pred_check_branch
          %279 = sbr.rel (%p277) target = $region40
        $region39: #{tpu_custom_call.1} parent=35 // pred_region
          %281 = dma.done %s273, 128
        $region40: #{tpu_custom_call.1} parent=35 // pred_fallthru
          _
        %s282 = sand.u32 %s25, 1
        %s283 = scalar_lea.sflag [#allocation9], %s282
        %s284 = sand.u32 %s82, 1
        %s285 = smul.addr %s284, 8
        %s286 = scalar_lea.vmem [#allocation8], %s285
        // Predicated region
        $region41: #{tpu_custom_call.1} parent=35 // pred_check
          %p287 = pneg %p95
        $region42: #{tpu_custom_call.1} parent=35 // pred_check_branch
          %289 = sbr.rel (%p287) target = $region44
        $region43: #{tpu_custom_call.1} parent=35 // pred_region
          %291 = dma.done %s283, 128
        $region44: #{tpu_custom_call.1} parent=35 // pred_fallthru
          _
        %s292 = sand.u32 %s25, 1
        %s293 = scalar_lea.sflag [#allocation9], %s292
        %s294 = sand.u32 %s110, 1
        %s295 = smul.addr %s294, 8
        %s296 = scalar_lea.vmem [#allocation10], %s295
        // Predicated region
        $region45: #{tpu_custom_call.1} parent=35 // pred_check
          %p297 = pneg %p123
        $region46: #{tpu_custom_call.1} parent=35 // pred_check_branch
          %299 = sbr.rel (%p297) target = $region48
        $region47: #{tpu_custom_call.1} parent=35 // pred_region
          %301 = dma.done %s293, 128
        $region48: #{tpu_custom_call.1} parent=35 // pred_fallthru
          _
        // Predicated region
        $region49: #{tpu_custom_call.1} parent=35 // pred_check
          %p302 = pneg %p144
        $region50: #{tpu_custom_call.1} parent=35 // pred_check_branch
          %304 = sbr.rel (%p302) target = $region52
        $region51: #{tpu_custom_call.1} parent=35 // pred_region
          %306 = dma.done [#allocation12], 512
        $region52: #{tpu_custom_call.1} parent=35 // pred_fallthru
          _
        %s307 = sand.u32 %s54, 1
        %s308 = scalar_lea.sflag [#allocation6], %s307
        %s309 = sand.u32 %s54, 1
        %s310 = smul.addr %s309, 8
        %s311 = scalar_lea.vmem [#allocation5], %s310
        %p312 = pneg %p67
        %p313 = pneg %p64
        %s314 = sand.u32 %s25, 1
        %s315 = scalar_lea.sflag [#allocation9], %s314
        %s316 = sand.u32 %s82, 1
        %s317 = smul.addr %s316, 8
        %s318 = scalar_lea.vmem [#allocation8], %s317
        %p319 = pneg %p95
        %p320 = pneg %p92
        %s321 = sand.u32 %s25, 1
        %s322 = scalar_lea.sflag [#allocation9], %s321
        %s323 = sand.u32 %s110, 1
        %s324 = smul.addr %s323, 8
        %s325 = scalar_lea.vmem [#allocation10], %s324
        %p326 = pneg %p123
        %p327 = pneg %p120
        %p328 = pneg %p144
        %p329 = pneg %p141
        %p330 = pneg %p172
        %p331 = pneg %p169
        %s332 = sand.u32 %s159, 1
        %s333 = scalar_lea.sflag [#allocation7], %s332
        %s334 = sand.u32 %s159, 1
        %s335 = smul.addr %s334, 8
        %s336 = scalar_lea.vmem [#allocation13], %s335
        %p337 = scmp.eq.s32.totalorder %s32, 0
        // Predicated region
        $region53: #{tpu_custom_call.1} parent=35 // pred_check
          %p338 = pneg %p337
        $region54: #{tpu_custom_call.1} parent=35 // pred_check_branch
          %340 = sbr.rel (%p338) target = $region56
        $region55: #{tpu_custom_call.1} parent=35 // pred_region
          %vm341 = vcmask 7168
          %342 = vst.msk [vmem:[#allocation2] sm:$0xff] %vm341, -inf
          %343 = vst.msk [vmem:[#allocation2 + $0x8] sm:$0xff] %vm341, -inf
          %344 = vst.msk [vmem:[#allocation2 + $0x10] sm:$0xff] %vm341, -inf
          %345 = vst.msk [vmem:[#allocation2 + $0x18] sm:$0xff] %vm341, -inf
          %346 = vst.msk [vmem:[#allocation3] sm:$0xff] %vm341, 0.0
          %347 = vst.msk [vmem:[#allocation3 + $0x8] sm:$0xff] %vm341, 0.0
          %348 = vst.msk [vmem:[#allocation3 + $0x10] sm:$0xff] %vm341, 0.0
          %349 = vst.msk [vmem:[#allocation3 + $0x18] sm:$0xff] %vm341, 0.0
          %vm350 = vcmask 261120
          %351 = vst.msk [vmem:[#allocation4] sm:$0xff] %vm350, 0.0
        $region56: #{tpu_custom_call.1} parent=35 // pred_fallthru
          _
        %v352 = vld [vmem:[%s276] sm:$0xff]
        %v353 = vld [vmem:[%s286] sm:$0xff]
        %v354 = vld [vmem:[%s296] sm:$0xff]
        %vm355 = vcmask 64512
        %v357 = vsel %vm355, %v352, 0
        %v360 = vsel %vm355, %v353, 0
        %362 = vmatpush.xpose.msra.mxu0 0.0
        %363 = vmatpush.xpose.msra.mxu0 0.0
        %364 = vmatpush.xpose.msra.mxu0 0.0
        %365 = vmatpush.xpose.msra.mxu0 0.0
        %366 = vmatpush.xpose.msra.mxu0 0.0
        %367 = vmatpush.xpose.msra.mxu0 0.0
        %368 = vmatpush.xpose.msra.mxu0 0.0
        %369 = vmatpush.xpose.msra.mxu0 0.0
        %370 = vmatpush.xpose.msra.mxu0 0.0
        %371 = vmatpush.xpose.msra.mxu0 0.0
        %372 = vmatpush.xpose.msra.mxu0 0.0
        %373 = vmatpush.xpose.msra.mxu0 0.0
        %374 = vmatpush.xpose.msra.mxu0 0.0
        %375 = vmatpush.xpose.msra.mxu0 0.0
        %376 = vmatpush.xpose.msra.mxu0 0.0
        %377 = vmatpush.xpose.msra.mxu0 %v360
        %378 = vmatmul.f32.gmra.mxu0 %v357
        %v379 = vpop.f32.mrf.mxu0
        %v380 = vadd.f32 0.0, %v379
        %381 = vdwg.mxu0
        %v382 = vld [vmem:[#allocation2] sm:$0xff]
        %v383 = vsel %vm355, %v380, -inf
        %384 = vmax.xlane.f32.xlu0 %v383
        %v385 = vpop.xlane.xlu0 %384
        %v386 = vmax.f32 %v382, %v385
        %v387 = vsub.f32 %v382, %v386
        %v388 = vmul.f32 %v387, 1.442695
        %v389 = vpow.pop %v388
        %391 = vset.pattern.permute.xlu0 0
        %392 = vperm.xlu0 %391, %v386
        %v393 = vpop.permute.xlu0 %392
        %v395 = vsub.f32 %v380, %v393
        %v396 = vmul.f32 %v395, 1.442695
        %v397 = vpow.pop %v396
        %v398 = vld [vmem:[#allocation3] sm:$0xff]
        %v399 = vmul.f32 %v389, %v398
        %v400 = vsel %vm355, %v397, 0.0
        %401 = vadd.xlane.f32.xlu0 %v400
        %v402 = vpop.xlane.xlu0 %401
        %v403 = vadd.f32 %v399, %v402
        %vm404 = vcmask 7168
        %405 = vst.msk [vmem:[#allocation3] sm:$0xff] %vm404, %v403
        %v407 = vsel %vm355, %v397, 0
        %409 = vmatpush.msra.mxu0 0.0
        %410 = vmatpush.msra.mxu0 0.0
        %411 = vmatpush.msra.mxu0 0.0
        %412 = vmatpush.msra.mxu0 0.0
        %413 = vmatpush.msra.mxu0 0.0
        %414 = vmatpush.msra.mxu0 0.0
        %415 = vmatpush.msra.mxu0 0.0
        %416 = vmatpush.msra.mxu0 0.0
        %417 = vmatpush.msra.mxu0 0.0
        %418 = vmatpush.msra.mxu0 0.0
        %419 = vmatpush.msra.mxu0 0.0
        %420 = vmatpush.msra.mxu0 0.0
        %421 = vmatpush.msra.mxu0 0.0
        %422 = vmatpush.msra.mxu0 0.0
        %423 = vmatpush.msra.mxu0 0.0
        %424 = vmatpush.msra.mxu0 %v354
        %425 = vmatmul.f32.gmra.mxu0 %v407
        %v426 = vpop.f32.mrf.mxu0
        %v427 = vadd.f32 0.0, %v426
        %428 = vdwg.mxu0
        %v429 = vld [vmem:[#allocation4] sm:$0xff]
        %431 = vset.pattern.permute.xlu0 0
        %432 = vperm.xlu0 %431, %v389
        %v433 = vpop.permute.xlu0 %432
        %v435 = vmul.f32 %v433, %v429
        %v436 = vadd.f32 %v435, %v427
        %437 = vst.msk [vmem:[#allocation4] sm:$0xff] %vm355, %v436
        %438 = vst.msk [vmem:[#allocation2] sm:$0xff] %vm404, %v386
        %439 = vrot.lane.b32.xlu0 %v352, 120
        %v440 = vpop.permute.xlu0 %439
        %441 = vrot.lane.b32.xlu0 %v353, 120
        %v442 = vpop.permute.xlu0 %441
        %v443 = vsel %vm355, %v440, 0
        %v445 = vsel %vm355, %v442, 0
        %447 = vmatpush.xpose.msra.mxu0 0.0
        %448 = vmatpush.xpose.msra.mxu0 0.0
        %449 = vmatpush.xpose.msra.mxu0 0.0
        %450 = vmatpush.xpose.msra.mxu0 0.0
        %451 = vmatpush.xpose.msra.mxu0 0.0
        %452 = vmatpush.xpose.msra.mxu0 0.0
        %453 = vmatpush.xpose.msra.mxu0 0.0
        %454 = vmatpush.xpose.msra.mxu0 0.0
        %455 = vmatpush.xpose.msra.mxu0 0.0
        %456 = vmatpush.xpose.msra.mxu0 0.0
        %457 = vmatpush.xpose.msra.mxu0 0.0
        %458 = vmatpush.xpose.msra.mxu0 0.0
        %459 = vmatpush.xpose.msra.mxu0 0.0
        %460 = vmatpush.xpose.msra.mxu0 0.0
        %461 = vmatpush.xpose.msra.mxu0 0.0
        %462 = vmatpush.xpose.msra.mxu0 %v445
        %463 = vmatmul.f32.gmra.mxu0 %v443
        %v464 = vpop.f32.mrf.mxu0
        %v465 = vadd.f32 0.0, %v464
        %466 = vdwg.mxu0
        %s467 = scalar_lea.vmem [#allocation2], 8
        %v468 = vld [vmem:[%s467] sm:$0xff]
        %v469 = vsel %vm355, %v465, -inf
        %470 = vmax.xlane.f32.xlu0 %v469
        %v471 = vpop.xlane.xlu0 %470
        %v472 = vmax.f32 %v468, %v471
        %v473 = vsub.f32 %v468, %v472
        %v474 = vmul.f32 %v473, 1.442695
        %v475 = vpow.pop %v474
        %477 = vset.pattern.permute.xlu0 0
        %478 = vperm.xlu0 %477, %v472
        %v479 = vpop.permute.xlu0 %478
        %v481 = vsub.f32 %v465, %v479
        %v482 = vmul.f32 %v481, 1.442695
        %v483 = vpow.pop %v482
        %s484 = scalar_lea.vmem [#allocation3], 8
        %v485 = vld [vmem:[%s484] sm:$0xff]
        %v486 = vmul.f32 %v475, %v485
        %v487 = vsel %vm355, %v483, 0.0
        %488 = vadd.xlane.f32.xlu0 %v487
        %v489 = vpop.xlane.xlu0 %488
        %v490 = vadd.f32 %v486, %v489
        %491 = vst.msk [vmem:[%s484] sm:$0xff] %vm404, %v490
        %493 = vrot.lane.b32.xlu0 %v354, 120
        %v494 = vpop.permute.xlu0 %493
        %v497 = vsel %vm355, %v483, 0
        %499 = vmatpush.msra.mxu0 0.0
        %500 = vmatpush.msra.mxu0 0.0
        %501 = vmatpush.msra.mxu0 0.0
        %502 = vmatpush.msra.mxu0 0.0
        %503 = vmatpush.msra.mxu0 0.0
        %504 = vmatpush.msra.mxu0 0.0
        %505 = vmatpush.msra.mxu0 0.0
        %506 = vmatpush.msra.mxu0 0.0
        %507 = vmatpush.msra.mxu0 0.0
        %508 = vmatpush.msra.mxu0 0.0
        %509 = vmatpush.msra.mxu0 0.0
        %510 = vmatpush.msra.mxu0 0.0
        %511 = vmatpush.msra.mxu0 0.0
        %512 = vmatpush.msra.mxu0 0.0
        %513 = vmatpush.msra.mxu0 0.0
        %514 = vmatpush.msra.mxu0 %v494
        %515 = vmatmul.f32.gmra.mxu0 %v497
        %v516 = vpop.f32.mrf.mxu0
        %v517 = vadd.f32 0.0, %v516
        %518 = vdwg.mxu0
        %v519 = vld [vmem:[#allocation4] sm:$0xff]
        %521 = vset.pattern.permute.xlu0 0
        %522 = vperm.xlu0 %521, %v475
        %v523 = vpop.permute.xlu0 %522
        %v525 = vmul.f32 %v523, %v519
        %527 = vrot.lane.b32.xlu0 %v517, 8
        %v528 = vpop.permute.xlu0 %527
        %v530 = vadd.f32 %v525, %v528
        %vm531 = vcmask 130112
        %532 = vst.msk [vmem:[#allocation4] sm:$0xff] %vm531, %v530
        %533 = vst.msk [vmem:[%s467] sm:$0xff] %vm404, %v472
        %534 = vrot.lane.b32.xlu0 %v352, 112
        %v535 = vpop.permute.xlu0 %534
        %536 = vrot.lane.b32.xlu0 %v353, 112
        %v537 = vpop.permute.xlu0 %536
        %v538 = vsel %vm355, %v535, 0
        %v540 = vsel %vm355, %v537, 0
        %542 = vmatpush.xpose.msra.mxu0 0.0
        %543 = vmatpush.xpose.msra.mxu0 0.0
        %544 = vmatpush.xpose.msra.mxu0 0.0
        %545 = vmatpush.xpose.msra.mxu0 0.0
        %546 = vmatpush.xpose.msra.mxu0 0.0
        %547 = vmatpush.xpose.msra.mxu0 0.0
        %548 = vmatpush.xpose.msra.mxu0 0.0
        %549 = vmatpush.xpose.msra.mxu0 0.0
        %550 = vmatpush.xpose.msra.mxu0 0.0
        %551 = vmatpush.xpose.msra.mxu0 0.0
        %552 = vmatpush.xpose.msra.mxu0 0.0
        %553 = vmatpush.xpose.msra.mxu0 0.0
        %554 = vmatpush.xpose.msra.mxu0 0.0
        %555 = vmatpush.xpose.msra.mxu0 0.0
        %556 = vmatpush.xpose.msra.mxu0 0.0
        %557 = vmatpush.xpose.msra.mxu0 %v540
        %558 = vmatmul.f32.gmra.mxu0 %v538
        %v559 = vpop.f32.mrf.mxu0
        %v560 = vadd.f32 0.0, %v559
        %561 = vdwg.mxu0
        %s562 = scalar_lea.vmem [#allocation2], 16
        %v563 = vld [vmem:[%s562] sm:$0xff]
        %v564 = vsel %vm355, %v560, -inf
        %565 = vmax.xlane.f32.xlu0 %v564
        %v566 = vpop.xlane.xlu0 %565
        %v567 = vmax.f32 %v563, %v566
        %v568 = vsub.f32 %v563, %v567
        %v569 = vmul.f32 %v568, 1.442695
        %v570 = vpow.pop %v569
        %572 = vset.pattern.permute.xlu0 0
        %573 = vperm.xlu0 %572, %v567
        %v574 = vpop.permute.xlu0 %573
        %v576 = vsub.f32 %v560, %v574
        %v577 = vmul.f32 %v576, 1.442695
        %v578 = vpow.pop %v577
        %s579 = scalar_lea.vmem [#allocation3], 16
        %v580 = vld [vmem:[%s579] sm:$0xff]
        %v581 = vmul.f32 %v570, %v580
        %v582 = vsel %vm355, %v578, 0.0
        %583 = vadd.xlane.f32.xlu0 %v582
        %v584 = vpop.xlane.xlu0 %583
        %v585 = vadd.f32 %v581, %v584
        %586 = vst.msk [vmem:[%s579] sm:$0xff] %vm404, %v585
        %587 = vrot.lane.b32.xlu0 %v354, 112
        %v588 = vpop.permute.xlu0 %587
        %v591 = vsel %vm355, %v578, 0
        %593 = vmatpush.msra.mxu0 0.0
        %594 = vmatpush.msra.mxu0 0.0
        %595 = vmatpush.msra.mxu0 0.0
        %596 = vmatpush.msra.mxu0 0.0
        %597 = vmatpush.msra.mxu0 0.0
        %598 = vmatpush.msra.mxu0 0.0
        %599 = vmatpush.msra.mxu0 0.0
        %600 = vmatpush.msra.mxu0 0.0
        %601 = vmatpush.msra.mxu0 0.0
        %602 = vmatpush.msra.mxu0 0.0
        %603 = vmatpush.msra.mxu0 0.0
        %604 = vmatpush.msra.mxu0 0.0
        %605 = vmatpush.msra.mxu0 0.0
        %606 = vmatpush.msra.mxu0 0.0
        %607 = vmatpush.msra.mxu0 0.0
        %608 = vmatpush.msra.mxu0 %v588
        %609 = vmatmul.f32.gmra.mxu0 %v591
        %v610 = vpop.f32.mrf.mxu0
        %v611 = vadd.f32 0.0, %v610
        %612 = vdwg.mxu0
        %v613 = vld [vmem:[#allocation4] sm:$0xff]
        %615 = vset.pattern.permute.xlu0 0
        %616 = vperm.xlu0 %615, %v570
        %v617 = vpop.permute.xlu0 %616
        %v619 = vmul.f32 %v617, %v613
        %621 = vrot.lane.b32.xlu0 %v611, 16
        %v622 = vpop.permute.xlu0 %621
        %v624 = vadd.f32 %v619, %v622
        %vm625 = vcmask 195712
        %626 = vst.msk [vmem:[#allocation4] sm:$0xff] %vm625, %v624
        %627 = vst.msk [vmem:[%s562] sm:$0xff] %vm404, %v567
        %628 = vrot.lane.b32.xlu0 %v352, 104
        %v629 = vpop.permute.xlu0 %628
        %630 = vrot.lane.b32.xlu0 %v353, 104
        %v631 = vpop.permute.xlu0 %630
        %v632 = vsel %vm355, %v629, 0
        %v634 = vsel %vm355, %v631, 0
        %636 = vmatpush.xpose.msra.mxu0 0.0
        %637 = vmatpush.xpose.msra.mxu0 0.0
        %638 = vmatpush.xpose.msra.mxu0 0.0
        %639 = vmatpush.xpose.msra.mxu0 0.0
        %640 = vmatpush.xpose.msra.mxu0 0.0
        %641 = vmatpush.xpose.msra.mxu0 0.0
        %642 = vmatpush.xpose.msra.mxu0 0.0
        %643 = vmatpush.xpose.msra.mxu0 0.0
        %644 = vmatpush.xpose.msra.mxu0 0.0
        %645 = vmatpush.xpose.msra.mxu0 0.0
        %646 = vmatpush.xpose.msra.mxu0 0.0
        %647 = vmatpush.xpose.msra.mxu0 0.0
        %648 = vmatpush.xpose.msra.mxu0 0.0
        %649 = vmatpush.xpose.msra.mxu0 0.0
        %650 = vmatpush.xpose.msra.mxu0 0.0
        %651 = vmatpush.xpose.msra.mxu0 %v634
        %652 = vmatmul.f32.gmra.mxu0 %v632
        %v653 = vpop.f32.mrf.mxu0
        %v654 = vadd.f32 0.0, %v653
        %655 = vdwg.mxu0
        %s656 = scalar_lea.vmem [#allocation2], 24
        %v657 = vld [vmem:[%s656] sm:$0xff]
        %v658 = vsel %vm355, %v654, -inf
        %659 = vmax.xlane.f32.xlu0 %v658
        %v660 = vpop.xlane.xlu0 %659
        %v661 = vmax.f32 %v657, %v660
        %v662 = vsub.f32 %v657, %v661
        %v663 = vmul.f32 %v662, 1.442695
        %v664 = vpow.pop %v663
        %666 = vset.pattern.permute.xlu0 0
        %667 = vperm.xlu0 %666, %v661
        %v668 = vpop.permute.xlu0 %667
        %v670 = vsub.f32 %v654, %v668
        %v671 = vmul.f32 %v670, 1.442695
        %v672 = vpow.pop %v671
        %s673 = scalar_lea.vmem [#allocation3], 24
        %v674 = vld [vmem:[%s673] sm:$0xff]
        %v675 = vmul.f32 %v664, %v674
        %v676 = vsel %vm355, %v672, 0.0
        %677 = vadd.xlane.f32.xlu0 %v676
        %v678 = vpop.xlane.xlu0 %677
        %v679 = vadd.f32 %v675, %v678
        %680 = vst.msk [vmem:[%s673] sm:$0xff] %vm404, %v679
        %681 = vrot.lane.b32.xlu0 %v354, 104
        %v682 = vpop.permute.xlu0 %681
        %v685 = vsel %vm355, %v672, 0
        %687 = vmatpush.msra.mxu0 0.0
        %688 = vmatpush.msra.mxu0 0.0
        %689 = vmatpush.msra.mxu0 0.0
        %690 = vmatpush.msra.mxu0 0.0
        %691 = vmatpush.msra.mxu0 0.0
        %692 = vmatpush.msra.mxu0 0.0
        %693 = vmatpush.msra.mxu0 0.0
        %694 = vmatpush.msra.mxu0 0.0
        %695 = vmatpush.msra.mxu0 0.0
        %696 = vmatpush.msra.mxu0 0.0
        %697 = vmatpush.msra.mxu0 0.0
        %698 = vmatpush.msra.mxu0 0.0
        %699 = vmatpush.msra.mxu0 0.0
        %700 = vmatpush.msra.mxu0 0.0
        %701 = vmatpush.msra.mxu0 0.0
        %702 = vmatpush.msra.mxu0 %v682
        %703 = vmatmul.f32.gmra.mxu0 %v685
        %v704 = vpop.f32.mrf.mxu0
        %v705 = vadd.f32 0.0, %v704
        %706 = vdwg.mxu0
        %v707 = vld [vmem:[#allocation4] sm:$0xff]
        %709 = vset.pattern.permute.xlu0 0
        %710 = vperm.xlu0 %709, %v664
        %v711 = vpop.permute.xlu0 %710
        %v713 = vmul.f32 %v711, %v707
        %715 = vrot.lane.b32.xlu0 %v705, 24
        %v716 = vpop.permute.xlu0 %715
        %v718 = vadd.f32 %v713, %v716
        %vm719 = vcmask 261312
        %720 = vst.msk [vmem:[#allocation4] sm:$0xff] %vm719, %v718
        %721 = vst.msk [vmem:[%s656] sm:$0xff] %vm404, %v661
        // Predicated region
        $region57: #{tpu_custom_call.1} parent=35 // pred_check
          %p722 = pneg %p337
        $region58: #{tpu_custom_call.1} parent=35 // pred_check_branch
          %724 = sbr.rel (%p722) target = $region60
        $region59: #{tpu_custom_call.1} parent=35 // pred_region
          %v725 = vld [vmem:[#allocation3] sm:$0xff]
          %v726 = vrcp.pop %v725
          %v727 = vmul.f32 %v725, %v726
          %v728 = vsub.f32 2.0, %v727
          %v729 = vmul.f32 %v726, %v728
          %v730 = vld [vmem:[#allocation4] sm:$0xff]
          %732 = vset.pattern.permute.xlu0 0
          %733 = vperm.xlu0 %732, %v729
          %v734 = vpop.permute.xlu0 %733
          %v736 = vmul.f32 %v730, %v734
          %737 = vst.msk [vmem:[#allocation4] sm:$0xff] %vm355, %v736
          %v738 = vld [vmem:[%s484] sm:$0xff]
          %v739 = vrcp.pop %v738
          %v740 = vmul.f32 %v738, %v739
          %v741 = vsub.f32 2.0, %v740
          %v742 = vmul.f32 %v739, %v741
          %v743 = vld [vmem:[#allocation4] sm:$0xff]
          %745 = vset.pattern.permute.xlu0 0
          %746 = vperm.xlu0 %745, %v742
          %v747 = vpop.permute.xlu0 %746
          %v749 = vmul.f32 %v743, %v747
          %750 = vst.msk [vmem:[#allocation4] sm:$0xff] %vm531, %v749
          %v751 = vld [vmem:[%s579] sm:$0xff]
          %v752 = vrcp.pop %v751
          %v753 = vmul.f32 %v751, %v752
          %v754 = vsub.f32 2.0, %v753
          %v755 = vmul.f32 %v752, %v754
          %v756 = vld [vmem:[#allocation4] sm:$0xff]
          %758 = vset.pattern.permute.xlu0 0
          %759 = vperm.xlu0 %758, %v755
          %v760 = vpop.permute.xlu0 %759
          %v762 = vmul.f32 %v756, %v760
          %763 = vst.msk [vmem:[#allocation4] sm:$0xff] %vm625, %v762
          %v764 = vld [vmem:[%s673] sm:$0xff]
          %v765 = vrcp.pop %v764
          %v766 = vmul.f32 %v764, %v765
          %v767 = vsub.f32 2.0, %v766
          %v768 = vmul.f32 %v765, %v767
          %v769 = vld [vmem:[#allocation4] sm:$0xff]
          %771 = vset.pattern.permute.xlu0 0
          %772 = vperm.xlu0 %771, %v768
          %v773 = vpop.permute.xlu0 %772
          %v775 = vmul.f32 %v769, %v773
          %776 = vst.msk [vmem:[#allocation4] sm:$0xff] %vm719, %v775
          %v777 = vld [vmem:[#allocation4] sm:$0xff]
          %v778 = vld [vmem:[#allocation11] sm:$0xff]
          %v779 = vld [vmem:[#allocation11 + $0x8] sm:$0xff]
          %v780 = vld [vmem:[#allocation11 + $0x10] sm:$0xff]
          %v781 = vld [vmem:[#allocation11 + $0x18] sm:$0xff]
          %vm782 = vcmask 261120
          %v784 = vsel %vm782, %v777, 0
          %786 = vmatpush.msra.mxu0 0.0
          %787 = vmatpush.msra.mxu0 0.0
          %788 = vmatpush.msra.mxu0 0.0
          %789 = vmatpush.msra.mxu0 0.0
          %790 = vmatpush.msra.mxu0 0.0
          %791 = vmatpush.msra.mxu0 0.0
          %792 = vmatpush.msra.mxu0 0.0
          %793 = vmatpush.msra.mxu0 0.0
          %794 = vmatpush.msra.mxu0 0.0
          %795 = vmatpush.msra.mxu0 0.0
          %796 = vmatpush.msra.mxu0 0.0
          %797 = vmatpush.msra.mxu0 0.0
          %798 = vmatpush.msra.mxu0 %v781
          %799 = vmatpush.msra.mxu0 %v780
          %800 = vmatpush.msra.mxu0 %v779
          %801 = vmatpush.msra.mxu0 %v778
          %802 = vmatmul.f32.gmra.mxu0 %v784
          %v803 = vpop.f32.mrf.mxu0
          %v804 = vadd.f32 0.0, %v803
          %805 = vdwg.mxu0
          %806 = vst.msk [vmem:[%s336] sm:$0xff] %vm782, %v804
        $region60: #{tpu_custom_call.1} parent=35 // pred_fallthru
          _
        %s807 = sand.u32 %s159, 1
        %s808 = scalar_lea.sflag [#allocation7], %s807
        %s809 = sand.u32 %s159, 1
        %s810 = smul.addr %s809, 8
        %s811 = scalar_lea.vmem [#allocation13], %s810
        // Predicated region
        $region61: #{tpu_custom_call.1} parent=35 // pred_check
          %p812 = pneg %p169
        $region62: #{tpu_custom_call.1} parent=35 // pred_check_branch
          %814 = sbr.rel (%p812) target = $region64
        $region63: #{tpu_custom_call.1} parent=35 // pred_region
          %816 = vsyncadd %s808, 0
          %s817 = sadd.s32 %s31, %s30
          %s818 = smul.addr %s817, 8
          %s819 = scalar_lea.hbm %s4, %s818
          %s821 = sshll.u32 %s811, 4
          %s822 = int_to_ptr.vmem [resolvable:$true] %s821
          %s823 = sshll.u32 %s819, 4
          %s824 = int_to_ptr.hbm [resolvable:$true] %s823
          %826 = dma.vmem_to_hbm [thread:$0]  %s822, 128, %s824, %s808
        $region64: #{tpu_custom_call.1} parent=35 // pred_fallthru
          _
      $region36: #{tpu_custom_call.1} parent=5 // pred_fallthru
        _
      %p827 = scmp.le.s32.totalorder 2, %s20
      // Predicated region
      $region65: #{tpu_custom_call.1} parent=5 // pred_check
        %p828 = pneg %p827
      $region66: #{tpu_custom_call.1} parent=5 // pred_check_branch
        %830 = sbr.rel (%p828) target = $region68
      $region67: #{tpu_custom_call.1} parent=5 // pred_region
        %s831 = ssub.s32 %s20, 2
        // Predicated region
        $region69: #{tpu_custom_call.1} parent=67 // pred_check
          %p832 = pneg %p175
        $region70: #{tpu_custom_call.1} parent=67 // pred_check_branch
          %834 = sbr.rel (%p832) target = $region72
        $region71: #{tpu_custom_call.1} parent=67 // pred_region
          %s835 = sand.u32 %s160, 1
          %s836 = scalar_lea.sflag [#allocation7], %s835
          %s837 = sand.u32 %s160, 1
          %s838 = smul.addr %s837, 8
          %s839 = scalar_lea.vmem [#allocation13], %s838
          %841 = dma.done %s836, 128
        $region72: #{tpu_custom_call.1} parent=67 // pred_fallthru
          _
      $region68: #{tpu_custom_call.1} parent=5 // pred_fallthru
        _
    $region6: #{tpu_custom_call.1} parent=1 // loop_footer
      %s24 = sadd.s32 1, %s20
    $region7: #{tpu_custom_call.1} parent=1 // loop_footer_branch
      %19 = sbr.rel target = $region3
    $region8: #{tpu_custom_call.1} parent=1 // loop_exit
      _
    %842 = vsyncpa [#allocation6], 1
    %s843 = scalar_lea.sflag [#allocation6], 1
    %844 = vsyncpa %s843, 1
    %845 = vsyncpa [#allocation9], 1
    %s846 = scalar_lea.sflag [#allocation9], 1
    %847 = vsyncpa %s846, 1
    %848 = vsyncpa [#allocation12], 1
    %849 = vsyncpa [#allocation7], 1
    %s850 = scalar_lea.sflag [#allocation7], 1
    %851 = vsyncpa %s850, 1

</llo_original>
